<compile_context>
chip_gen: v5e
topology: v5e:2x2
jax: 0.10.0
libtpu: 0.0.40
codegen_flags: <defaults>
</compile_context>

<pallas_src>
import jax
import jax.numpy as jnp
from jax.experimental import pallas as pl
from jax.experimental.pallas import tpu as pltpu

TILE_N = 512  # rows per grid step; multiple of the 128-lane width


def _linear3to1_kernel(params_ref, xT_ref, o_ref):
    # params_ref: SMEM (4,)          = [w0, w1, w2, b]
    # xT_ref:     VMEM (3, TILE_N)   features on sublanes, rows on lanes
    # o_ref:      VMEM (1, TILE_N)   lane-dense output row
    w0 = params_ref[0]
    w1 = params_ref[1]
    w2 = params_ref[2]
    b = params_ref[3]
    o_ref[...] = (w0 * xT_ref[0:1, :]
                  + w1 * xT_ref[1:2, :]
                  + w2 * xT_ref[2:3, :]
                  + b)


def model_with_single_input(x, weight, bias):
    """Forward pass of ModelWithSingleInput.

    x:      (N, 3) float32
    weight: (1, 3) float32   (PyTorch nn.Linear layout: (out_features, in_features))
    bias:   (1,)   float32
    returns (N,)   float32   (== linear1(x).squeeze())
    """
    n, in_f = x.shape
    assert in_f == 3

    # NOTE: for a literal N=8 batch, plain `x @ weight.T + bias` in XLA is
    # cheaper than any kernel launch; the Pallas path targets large N.
    n_pad = pl.cdiv(n, TILE_N) * TILE_N
    x_pad = jnp.pad(x, ((0, n_pad - n), (0, 0))) if n_pad != n else x

    # Layout plumbing: put N on the lane axis (one-time transpose in XLA).
    xT = x_pad.T                                                   # (3, n_pad)
    params = jnp.concatenate(
        [weight.reshape(-1), bias.reshape(-1)]).astype(jnp.float32)  # (4,)

    grid = (n_pad // TILE_N,)
    y2d = pl.pallas_call(
        _linear3to1_kernel,
        out_shape=jax.ShapeDtypeStruct((1, n_pad), x.dtype),
        grid_spec=pltpu.PrefetchScalarGridSpec(
            num_scalar_prefetch=0,
            grid=grid,
            in_specs=[
                pl.BlockSpec(memory_space=pltpu.MemorySpace.SMEM),  # params
                pl.BlockSpec((3, TILE_N), lambda i: (0, i)),        # xT tile
            ],
            out_specs=pl.BlockSpec((1, TILE_N), lambda i: (0, i)),
        ),
        compiler_params=pltpu.CompilerParams(
            dimension_semantics=("parallel",)),
    )(params, xT)

    # torch's y.squeeze(): drop size-1 dims (and strip any row padding).
    return jnp.squeeze(y2d[:, :n])


if __name__ == "__main__":
    key = jax.random.PRNGKey(0)
    kx, kw, kb = jax.random.split(key, 3)

    # deterministic parameter init (PyTorch Linear-style uniform bound 1/sqrt(3))
    bound = 1.0 / jnp.sqrt(3.0)
    weight = jax.random.uniform(kw, (1, 3), minval=-bound, maxval=bound,
                                dtype=jnp.float32)
    bias = jax.random.uniform(kb, (1,), minval=-bound, maxval=bound,
                              dtype=jnp.float32)

    fwd = jax.jit(model_with_single_input)

    # multi-tile case (exercises grid/pipelining) + tiny padded case (spec's N=8)
    for n in (1024, 8):
        x = jax.random.normal(jax.random.fold_in(kx, n), (n, 3),
                              dtype=jnp.float32)
        out = jax.block_until_ready(fwd(x, weight, bias))
        ref = jnp.squeeze(x @ weight.T + bias)
        assert out.shape == ref.shape, (out.shape, ref.shape)
        assert jnp.allclose(out, ref, atol=1e-5, rtol=1e-5)

    print("KERNEL_OK")
</pallas_src>

<mosaic_0001>
module attributes {stable_mosaic.version = 11 : i64} {
  func.func @_linear3to1_kernel(%arg0: i32, %arg1: memref<4xf32, #tpu.memory_space<smem>>, %arg2: memref<3x512xf32, #tpu.memory_space<vmem>>, %arg3: memref<1x512xf32, #tpu.memory_space<vmem>>) attributes {dimension_semantics = [#tpu.dimension_semantics<parallel>], iteration_bounds = array<i64: 2>, scalar_prefetch = 0 : i64, scratch_operands = 0 : i64, tpu.core_type = #tpu.core_type<tc>, window_params = [{transform_indices = @transform_0, window_bounds = array<i64: 4>}, {transform_indices = @transform_1, window_bounds = array<i64: 3, 512>}, {transform_indices = @transform_2, window_bounds = array<i64: 1, 512>}]} {
    %c0 = arith.constant 0 : index
    %0 = memref.load %arg1[%c0] : memref<4xf32, #tpu.memory_space<smem>>
    %c1 = arith.constant 1 : index
    %1 = memref.load %arg1[%c1] : memref<4xf32, #tpu.memory_space<smem>>
    %c2 = arith.constant 2 : index
    %2 = memref.load %arg1[%c2] : memref<4xf32, #tpu.memory_space<smem>>
    %c3 = arith.constant 3 : index
    %3 = memref.load %arg1[%c3] : memref<4xf32, #tpu.memory_space<smem>>
    %c0_0 = arith.constant 0 : index
    %c0_1 = arith.constant 0 : index
    %4 = vector.load %arg2[%c0_0, %c0_1] : memref<3x512xf32, #tpu.memory_space<vmem>>, vector<1x512xf32>
    %5 = vector.broadcast %0 : f32 to vector<1x512xf32>
    %6 = arith.mulf %5, %4 : vector<1x512xf32>
    %c1_2 = arith.constant 1 : index
    %c0_3 = arith.constant 0 : index
    %7 = vector.load %arg2[%c1_2, %c0_3] : memref<3x512xf32, #tpu.memory_space<vmem>>, vector<1x512xf32>
    %8 = vector.broadcast %1 : f32 to vector<1x512xf32>
    %9 = arith.mulf %8, %7 : vector<1x512xf32>
    %10 = arith.addf %6, %9 : vector<1x512xf32>
    %c2_4 = arith.constant 2 : index
    %c0_5 = arith.constant 0 : index
    %11 = vector.load %arg2[%c2_4, %c0_5] : memref<3x512xf32, #tpu.memory_space<vmem>>, vector<1x512xf32>
    %12 = vector.broadcast %2 : f32 to vector<1x512xf32>
    %13 = arith.mulf %12, %11 : vector<1x512xf32>
    %14 = arith.addf %10, %13 : vector<1x512xf32>
    %15 = vector.broadcast %3 : f32 to vector<1x512xf32>
    %16 = arith.addf %14, %15 : vector<1x512xf32>
    %c0_6 = arith.constant 0 : index
    %c0_7 = arith.constant 0 : index
    %17 = vector.load %arg3[%c0_6, %c0_7] : memref<1x512xf32, #tpu.memory_space<vmem>>, vector<1x512xf32>
    tpu.vector_store %arg3[%c0_6, %c0_7], %16 {strides = array<i32>} : memref<1x512xf32, #tpu.memory_space<vmem>>, vector<1x512xf32>,
    return
  }
  func.func @transform_0(%arg0: i32) -> i32 {
    %c0_i32 = arith.constant 0 : i32
    %c0_i32_0 = arith.constant 0 : i32
    return %c0_i32 : i32
  }
  func.func @transform_1(%arg0: i32) -> (i32, i32) {
    %c0_i32 = arith.constant 0 : i32
    %c0_i32_0 = arith.constant 0 : i32
    return %c0_i32, %arg0 : i32, i32
  }
  func.func @transform_2(%arg0: i32) -> (i32, i32) {
    %c0_i32 = arith.constant 0 : i32
    %c0_i32_0 = arith.constant 0 : i32
    return %c0_i32, %arg0 : i32, i32
  }
}

</mosaic_0001>

<llo_original>
// kernel: model_with_single_input.1
$region0: #{model_with_single_input.1}
  #allocation0 [shape = 'u32[]', space=smem, size = 0x4, offset = 0x4, fixed_abs, tag = 'smem constant byte address 0x4 - core index']
  #allocation1 [shape = 'u32[72,128]{1,0:T(1,128)}', space=vmem, size = 0x9000, scoped, tag = 'internal scratch']
  %s0 = inlined_call_operand.vmem [shape: f32[4], index: 0, kind: input, shape index: {}]
  %s1 = inlined_call_operand.hbm [shape: f32[3,1024], index: 1, kind: input, shape index: {}]
  %s2 = inlined_call_operand.hbm [shape: f32[1,1024], index: 2, kind: output, shape index: {}]
  %s3 = sld [smem:[#allocation0]]
  $region49: #{model_with_single_input.1} parent=0
    _
  %s5 = ssub.s32 1, %s3
  %s6 = scalar_select 0, %s5, %s3
  $region1: #{model_with_single_input.1} parent=0
    #allocation2 [shape = 'u8[512]{0}', space=smem, size = 0x200, scoped, tag = 'input window, operand 0, single buffered']
    #allocation3 [shape = 's32[2]{0}', space=sflag, size = 0x8, scoped, tag = 'scoped memory for model_with_single_input.1']
    #allocation4 [shape = 's32[2]{0}', space=sflag, size = 0x8, scoped, tag = 'scoped memory for model_with_single_input.1']
    #allocation5 [shape = 's32[2]{0}', space=sflag, size = 0x8, scoped, tag = 'scoped memory for model_with_single_input.1']
    #allocation6 [shape = 'u8[16384]{0}', space=vmem, size = 0x4000, scoped, tag = 'input window, operand 1']
    #allocation7 [shape = 'u8[4096]{0}', space=vmem, size = 0x1000, scoped, tag = 'output window, operand 0']
    %7 = vsyncpa [#allocation5], 0
    %8 = vsyncpa [#allocation3], 0
    %s9 = scalar_lea.sflag [#allocation3], 1
    %10 = vsyncpa %s9, 0
    %11 = vsyncpa [#allocation4], 0
    %s12 = scalar_lea.sflag [#allocation4], 1
    %13 = vsyncpa %s12, 0
    loop: start=0, step=1, limit=4
    $region2: #{model_with_single_input.1} parent=1 // loop_pre_header
      _
    $region3: #{model_with_single_input.1} parent=1 // loop_header
      %s15 = sphi 0, %s19
      %p16 = scmp.ge.s32.totalorder %s15, 4
      %s23 = sphi 0, %s23
      %s25 = sphi 0, %s23
      %s26 = sphi 0, %s25
      %s40 = sphi 0, %s26
      %s46 = sphi 0, %s48
      %s49 = sphi 0, %s46
      %s50 = sphi 0, %s49
      %s66 = sphi 0, %s50
      %s72 = sphi 0, %s74
      %s75 = sphi 0, %s72
      %s76 = sphi 0, %s75
      %s92 = sphi 0, %s76
    $region4: #{model_with_single_input.1} parent=1 // loop_header_branch
      %18 = sbr.rel (%p16) target = $region8
    $region5: #{model_with_single_input.1} parent=1 // loop_body
      %s20 = ssub.s32 %s15, 1
      %s21 = ssub.s32 %s15, 2
      %s22 = sadd.s32 %s15, 1
      %s24 = sadd.s32 %s23, 1
      %p27 = scmp.eq.s32.totalorder %s15, 1
      %p28 = scmp.ne.s32.totalorder %s23, %s25
      %p29 = scmp.eq.s32.totalorder %s15, 0
      %p30 = por %p28, %p29
      %p31 = scmp.ne.s32.totalorder %s23, %s25
      %p32 = scmp.eq.s32.totalorder %s20, 1
      %p33 = por %p31, %p32
      %p34 = scmp.ne.s32.totalorder %s25, %s26
      %p35 = scmp.eq.s32.totalorder %s20, 0
      %p36 = por %p34, %p35
      %p37 = scmp.ne.s32.totalorder %s25, %s26
      %p38 = scmp.eq.s32.totalorder %s21, 1
      %p39 = por %p37, %p38
      %p41 = scmp.ne.s32.totalorder %s26, %s40
      %p42 = scmp.eq.s32.totalorder %s21, 0
      %p43 = por %p41, %p42
      %s44 = ssub.s32 %s15, %s22
      %p45 = scmp.eq.s32.totalorder %s44, 0
      %s47 = sadd.s32 %s46, 1
      %s48 = scalar_select %p45, %s46, %s47
      %p51 = pneg %p45
      %p52 = scmp.eq.s32.totalorder %s15, 1
      %p53 = por %p51, %p52
      %p54 = scmp.ne.s32.totalorder %s46, %s49
      %p55 = scmp.eq.s32.totalorder %s15, 0
      %p56 = por %p54, %p55
      %p57 = scmp.ne.s32.totalorder %s46, %s49
      %p58 = scmp.eq.s32.totalorder %s20, 1
      %p59 = por %p57, %p58
      %p60 = scmp.ne.s32.totalorder %s49, %s50
      %p61 = scmp.eq.s32.totalorder %s20, 0
      %p62 = por %p60, %p61
      %p63 = scmp.ne.s32.totalorder %s49, %s50
      %p64 = scmp.eq.s32.totalorder %s21, 1
      %p65 = por %p63, %p64
      %p67 = scmp.ne.s32.totalorder %s50, %s66
      %p68 = scmp.eq.s32.totalorder %s21, 0
      %p69 = por %p67, %p68
      %s70 = ssub.s32 %s15, %s22
      %p71 = scmp.eq.s32.totalorder %s70, 0
      %s73 = sadd.s32 %s72, 1
      %s74 = scalar_select %p71, %s72, %s73
      %p77 = pneg %p71
      %p78 = scmp.eq.s32.totalorder %s15, 1
      %p79 = por %p77, %p78
      %p80 = scmp.ne.s32.totalorder %s72, %s75
      %p81 = scmp.eq.s32.totalorder %s15, 0
      %p82 = por %p80, %p81
      %p83 = scmp.ne.s32.totalorder %s72, %s75
      %p84 = scmp.eq.s32.totalorder %s20, 1
      %p85 = por %p83, %p84
      %p86 = scmp.ne.s32.totalorder %s75, %s76
      %p87 = scmp.eq.s32.totalorder %s20, 0
      %p88 = por %p86, %p87
      %p89 = scmp.ne.s32.totalorder %s75, %s76
      %p90 = scmp.eq.s32.totalorder %s21, 1
      %p91 = por %p89, %p90
      %p93 = scmp.ne.s32.totalorder %s76, %s92
      %p94 = scmp.eq.s32.totalorder %s21, 0
      %p95 = por %p93, %p94
      %p96 = scmp.le.s32.totalorder 1, %s15
      %p97 = scmp.lt.s32.totalorder %s15, 3
      %p98 = pnand %p96, %p97
      %p99 = pneg %p98
      // Predicated region
      $region9: #{model_with_single_input.1} parent=5 // pred_check
        _
      $region10: #{model_with_single_input.1} parent=5 // pred_check_branch
        %101 = sbr.rel (%p98) target = $region12
      $region11: #{model_with_single_input.1} parent=5 // pred_region
        %s102 = ssub.s32 %s15, 1
        // Predicated region
        $region13: #{model_with_single_input.1} parent=11 // pred_check
          %p103 = pneg %p36
        $region14: #{model_with_single_input.1} parent=11 // pred_check_branch
          %105 = sbr.rel (%p103) target = $region16
        $region15: #{model_with_single_input.1} parent=11 // pred_region
          %107 = vsyncadd [#allocation5], 0
          %s109 = sshll.u32 %s0, 4
          %s110 = int_to_ptr.vmem [resolvable:$true] %s109
          %112 = dma.vmem_to_smem %s110, 16, [#allocation2], [#allocation5]
        $region16: #{model_with_single_input.1} parent=11 // pred_fallthru
          _
      $region12: #{model_with_single_input.1} parent=5 // pred_fallthru
        _
      %p113 = scmp.lt.s32.totalorder %s15, 2
      // Predicated region
      $region17: #{model_with_single_input.1} parent=5 // pred_check
        %p114 = pneg %p113
      $region18: #{model_with_single_input.1} parent=5 // pred_check_branch
        %116 = sbr.rel (%p114) target = $region20
      $region19: #{model_with_single_input.1} parent=5 // pred_region
        // Predicated region
        $region21: #{model_with_single_input.1} parent=19 // pred_check
          %p117 = pneg %p56
        $region22: #{model_with_single_input.1} parent=19 // pred_check_branch
          %119 = sbr.rel (%p117) target = $region24
        $region23: #{model_with_single_input.1} parent=19 // pred_region
          %s120 = sand.u32 %s46, 1
          %s121 = scalar_lea.sflag [#allocation3], %s120
          %s122 = sand.u32 %s46, 1
          %s123 = smul.addr %s122, 16
          %s124 = scalar_lea.vmem [#allocation6], %s123
          %s125 = smul.u32 4, %s15
          %127 = vsyncadd %s121, 0
          %s128 = smul.addr %s125, 4
          %s129 = scalar_lea.hbm %s1, %s128
          %s131 = sshll.u32 %s129, 4
          %s132 = int_to_ptr.hbm [resolvable:$true] %s131
          %s133 = sshll.u32 %s124, 4
          %s134 = int_to_ptr.vmem [resolvable:$true] %s133
          %136 = dma.hbm_to_vmem [thread:$0]  %s132, 256, %s134, %s121
        $region24: #{model_with_single_input.1} parent=19 // pred_fallthru
          _
      $region20: #{model_with_single_input.1} parent=5 // pred_fallthru
        _
      %p137 = scmp.le.s32.totalorder 1, %s15
      %p138 = scmp.lt.s32.totalorder %s15, 3
      %p139 = pnand %p137, %p138
      %p140 = pneg %p139
      // Predicated region
      $region25: #{model_with_single_input.1} parent=5 // pred_check
        _
      $region26: #{model_with_single_input.1} parent=5 // pred_check_branch
        %142 = sbr.rel (%p139) target = $region28
      $region27: #{model_with_single_input.1} parent=5 // pred_region
        %s143 = ssub.s32 %s15, 1
        // Predicated region
        $region29: #{model_with_single_input.1} parent=27 // pred_check
          %p144 = pneg %p36
        $region30: #{model_with_single_input.1} parent=27 // pred_check_branch
          %146 = sbr.rel (%p144) target = $region32
        $region31: #{model_with_single_input.1} parent=27 // pred_region
          %148 = dma.done [#allocation5], 16
        $region32: #{model_with_single_input.1} parent=27 // pred_fallthru
          _
        %s149 = sand.u32 %s49, 1
        %s150 = scalar_lea.sflag [#allocation3], %s149
        %s151 = sand.u32 %s49, 1
        %s152 = smul.addr %s151, 16
        %s153 = scalar_lea.vmem [#allocation6], %s152
        // Predicated region
        $region33: #{model_with_single_input.1} parent=27 // pred_check
          %p154 = pneg %p62
        $region34: #{model_with_single_input.1} parent=27 // pred_check_branch
          %156 = sbr.rel (%p154) target = $region36
        $region35: #{model_with_single_input.1} parent=27 // pred_region
          %158 = dma.done %s150, 256
        $region36: #{model_with_single_input.1} parent=27 // pred_fallthru
          _
        %159 = sfence
        %p160 = pneg %p36
        %p161 = pneg %p33
        %s162 = sand.u32 %s49, 1
        %s163 = scalar_lea.sflag [#allocation3], %s162
        %s164 = sand.u32 %s49, 1
        %s165 = smul.addr %s164, 16
        %s166 = scalar_lea.vmem [#allocation6], %s165
        %p167 = pneg %p62
        %p168 = pneg %p59
        %p169 = pneg %p88
        %p170 = pneg %p85
        %s171 = sand.u32 %s75, 1
        %s172 = scalar_lea.sflag [#allocation4], %s171
        %s173 = sand.u32 %s75, 1
        %s174 = smul.addr %s173, 4
        %s175 = scalar_lea.vmem [#allocation7], %s174
        %s176 = smul.u32 4, %s20
        %s177 = smul.u32 4, %s20
        %s178 = sld [smem:[#allocation2]]
        %s179 = sld [smem:[#allocation2 + $0x1]]
        %s180 = sld [smem:[#allocation2 + $0x2]]
        %s181 = sld [smem:[#allocation2 + $0x3]]
        %v182 = vld [vmem:[%s153] ss:$4 sm:$0xf]
        %v183 = vstv %s178
        %v184 = vmul.f32 %v183, %v182
        %s185 = scalar_lea.vmem %s153, 1 [#allocation6]
        %v186 = vld [vmem:[%s185] ss:$4 sm:$0xf]
        %v187 = vstv %s179
        %v188 = vmul.f32 %v187, %v186
        %v189 = vadd.f32 %v184, %v188
        %s190 = scalar_lea.vmem %s153, 2 [#allocation6]
        %v191 = vld [vmem:[%s190] ss:$4 sm:$0xf]
        %v192 = vstv %s180
        %v193 = vmul.f32 %v192, %v191
        %v194 = vadd.f32 %v189, %v193
        %v195 = vstv %s181
        %v196 = vadd.f32 %v194, %v195
        %v197 = vlaneseq
        %vm198 = vcmp.ge.s32.totalorder %v197, 0
        %vm199 = vcmp.lt.s32.totalorder %v197, 512
        %vm200 = vmand %vm198, %vm199
        %201 = vst.msk [vmem:[%s175] sm:$0xf] %vm200, %v196
        %s202 = sand.u32 %s75, 1
        %s203 = scalar_lea.sflag [#allocation4], %s202
        %s204 = sand.u32 %s75, 1
        %s205 = smul.addr %s204, 4
        %s206 = scalar_lea.vmem [#allocation7], %s205
        // Predicated region
        $region37: #{model_with_single_input.1} parent=27 // pred_check
          %p207 = pneg %p85
        $region38: #{model_with_single_input.1} parent=27 // pred_check_branch
          %209 = sbr.rel (%p207) target = $region40
        $region39: #{model_with_single_input.1} parent=27 // pred_region
          %s210 = smul.u32 4, %s20
          %212 = vsyncadd %s203, 0
          %s213 = scalar_lea.hbm %s2, %s210
          %s215 = sshll.u32 %s206, 4
          %s216 = int_to_ptr.vmem [resolvable:$true] %s215
          %s217 = sshll.u32 %s213, 4
          %s218 = int_to_ptr.hbm [resolvable:$true] %s217
          %220 = dma.vmem_to_hbm [thread:$0]  %s216, 64, %s218, %s203
        $region40: #{model_with_single_input.1} parent=27 // pred_fallthru
          _
      $region28: #{model_with_single_input.1} parent=5 // pred_fallthru
        _
      %p221 = scmp.le.s32.totalorder 2, %s15
      // Predicated region
      $region41: #{model_with_single_input.1} parent=5 // pred_check
        %p222 = pneg %p221
      $region42: #{model_with_single_input.1} parent=5 // pred_check_branch
        %224 = sbr.rel (%p222) target = $region44
      $region43: #{model_with_single_input.1} parent=5 // pred_region
        %s225 = ssub.s32 %s15, 2
        // Predicated region
        $region45: #{model_with_single_input.1} parent=43 // pred_check
          %p226 = pneg %p91
        $region46: #{model_with_single_input.1} parent=43 // pred_check_branch
          %228 = sbr.rel (%p226) target = $region48
        $region47: #{model_with_single_input.1} parent=43 // pred_region
          %s229 = sand.u32 %s76, 1
          %s230 = scalar_lea.sflag [#allocation4], %s229
          %s231 = sand.u32 %s76, 1
          %s232 = smul.addr %s231, 4
          %s233 = scalar_lea.vmem [#allocation7], %s232
          %235 = dma.done %s230, 64
        $region48: #{model_with_single_input.1} parent=43 // pred_fallthru
          _
      $region44: #{model_with_single_input.1} parent=5 // pred_fallthru
        _
    $region6: #{model_with_single_input.1} parent=1 // loop_footer
      %s19 = sadd.s32 1, %s15
    $region7: #{model_with_single_input.1} parent=1 // loop_footer_branch
      %14 = sbr.rel target = $region3
    $region8: #{model_with_single_input.1} parent=1 // loop_exit
      _
    %236 = vsyncpa [#allocation3], 1
    %s237 = scalar_lea.sflag [#allocation3], 1
    %238 = vsyncpa %s237, 1
    %239 = vsyncpa [#allocation4], 1
    %s240 = scalar_lea.sflag [#allocation4], 1
    %241 = vsyncpa %s240, 1
    %242 = vsyncpa [#allocation5], 1
    %s243 = scalar_lea.sflag [#allocation5], 1
    %244 = vsyncpa %s243, 1

</llo_original>
